<compile_context>
chip_gen: v7x
topology: tpu7x:2x2x1
jax: 0.10.0
libtpu: 0.0.40
codegen_flags: <defaults>
</compile_context>

<pallas_src>
import jax
import jax.numpy as jnp
from jax.experimental import pallas as pl
from jax.experimental.pallas import tpu as pltpu

SEQ = 8          # length of the input token sequence
VOCAB = 10       # nn.Embedding(10, 5)
INPUT = 5        # input_size
HIDDEN = 20      # hidden_size
NUM_LAYERS = 2
OUT = 5          # output_size
H2 = 2 * HIDDEN  # combined (skewed) state width

# 8-sublane-aligned row offsets of each section inside the packed parameter slab.
IDS_OFF = 0        # token ids as f32 column          (SEQ,    1)
EMB_OFF = 8        # [emb @ W_ih0^T | 0]              (VOCAB,  H2)
BIAS_OFF = 24      # [b_ih0+b_hh0 | b_ih1+b_hh1]      (1,      H2)
WBLK_OFF = 32      # [[Whh0^T, Wih1^T],[0, Whh1^T]]   (H2,     H2)
WLIN_OFF = 72      # [0 ; W_lin^T]                    (H2,     OUT)
BLIN_OFF = 112     # b_lin                            (1,      OUT)
HINIT_OFF = 120    # [h0(0) | h1(0)]                  (1,      H2)
SLAB_ROWS = 128
SLAB_COLS = 128    # lane-dense slab -> single input DMA

OUT_ROWS = 8       # single (8,128) output tile: row 0 = logp, row 1 = [h0|h1]


def rnn_kernel(slab_ref, out_ref):
    # ---- one-time static slices of the single parameter slab ----
    ids_f = slab_ref[IDS_OFF:IDS_OFF + SEQ, 0:1]             # (SEQ, 1) f32
    emb_proj = slab_ref[EMB_OFF:EMB_OFF + VOCAB, 0:H2]       # (10, 40) cols 20:40 are 0
    bias = slab_ref[BIAS_OFF:BIAS_OFF + 1, 0:H2]             # (1, 40)  [b0 | b1]
    w_blk = slab_ref[WBLK_OFF:WBLK_OFF + H2, 0:H2]           # (40, 40) block recurrence matrix
    w_lin = slab_ref[WLIN_OFF:WLIN_OFF + H2, 0:OUT]          # (40, 5)  rows 0:20 are 0
    b_lin = slab_ref[BLIN_OFF:BLIN_OFF + 1, 0:OUT]           # (1, 5)
    v = slab_ref[HINIT_OFF:HINIT_OFF + 1, 0:H2]              # (1, 40)  [h0(0) | h1(0)]

    # ---- per-step additive matrix, built ONCE off the critical path:
    #      B[t] = [emb[ids[t]] @ Wih0^T + b0 | b1]  via one (SEQ,VOCAB)x(VOCAB,40) matmul ----
    ids_i = ids_f.astype(jnp.int32)                                   # (SEQ, 1)
    iota_v = jax.lax.broadcasted_iota(jnp.int32, (SEQ, VOCAB), 1)     # (SEQ, VOCAB)
    one_hot = (ids_i == iota_v).astype(jnp.float32)                   # (SEQ, VOCAB)
    B = jnp.dot(one_hot, emb_proj, preferred_element_type=jnp.float32) + bias  # (SEQ, 40)

    lane = jax.lax.broadcasted_iota(jnp.int32, (1, H2), 1)
    is_h0 = lane < HIDDEN                                             # True on h0 lanes

    # ---- leading layer-0-only step: v <- [h0(1) | h1(0)]
    #      (lanes 20:40 of the fused step are discarded; W_block's zero sub-block
    #       guarantees lanes 0:20 only depend on h0(0)). ----
    t_lead = jnp.tanh(jnp.dot(v, w_blk, preferred_element_type=jnp.float32) + B[0:1, :])
    v = jnp.where(is_h0, t_lead, v)

    # ---- fused skewed recurrence, statically unrolled:
    #      v(t+1) = tanh(v(t) @ W_block + B[t]); one MXU push + one tanh per step ----
    for t in range(1, SEQ):
        v = jnp.tanh(jnp.dot(v, w_blk, preferred_element_type=jnp.float32) + B[t:t + 1, :])
    # v == [h0(SEQ) | h1(SEQ-1)]

    # ---- trailing layer-1-only step: h1(SEQ) in lanes 20:40, keep h0(SEQ) ----
    t_tail = jnp.tanh(jnp.dot(v, w_blk, preferred_element_type=jnp.float32) + bias)
    v = jnp.where(is_h0, v, t_tail)                                   # [h0(SEQ) | h1(SEQ)]

    # ---- linear head (h1 selected by zero rows of w_lin) + stable log-softmax ----
    y = jnp.dot(v, w_lin, preferred_element_type=jnp.float32) + b_lin  # (1, OUT)
    m = jnp.max(y, axis=-1, keepdims=True)
    logp = y - (jnp.log(jnp.sum(jnp.exp(y - m), axis=-1, keepdims=True)) + m)

    # ---- single lane-padded output tile (one unmasked store, one output DMA) ----
    row0 = jnp.concatenate([logp, jnp.zeros((1, SLAB_COLS - OUT), jnp.float32)], axis=1)
    row1 = jnp.concatenate([v, jnp.zeros((1, SLAB_COLS - H2), jnp.float32)], axis=1)
    tail = jnp.zeros((OUT_ROWS - 2, SLAB_COLS), jnp.float32)
    out_ref[...] = jnp.concatenate([row0, row1, tail], axis=0)


def _pack_slab(ids, params, h_0):
    """Fold weights, build the 40x40 block matrix, and pack everything (ids, params,
    h_0) into one lane-dense (128,128) f32 slab -> a single input DMA."""
    emb_proj = params["emb"] @ params["wih0_t"]                          # (VOCAB, HIDDEN)
    bias = jnp.concatenate([params["bih0"] + params["bhh0"],
                            params["bih1"] + params["bhh1"]], axis=1)    # (1, H2)

    w_blk = jnp.zeros((H2, H2), jnp.float32)
    w_blk = w_blk.at[:HIDDEN, :HIDDEN].set(params["whh0_t"])
    w_blk = w_blk.at[:HIDDEN, HIDDEN:].set(params["wih1_t"])
    w_blk = w_blk.at[HIDDEN:, HIDDEN:].set(params["whh1_t"])

    w_lin = jnp.zeros((H2, OUT), jnp.float32).at[HIDDEN:, :].set(params["wlin_t"])

    slab = jnp.zeros((SLAB_ROWS, SLAB_COLS), jnp.float32)
    slab = slab.at[IDS_OFF:IDS_OFF + SEQ, 0:1].set(
        ids.astype(jnp.float32).reshape(SEQ, 1))
    slab = slab.at[EMB_OFF:EMB_OFF + VOCAB, 0:HIDDEN].set(emb_proj)     # cols 20:40 stay 0
    slab = slab.at[BIAS_OFF:BIAS_OFF + 1, 0:H2].set(bias)
    slab = slab.at[WBLK_OFF:WBLK_OFF + H2, 0:H2].set(w_blk)
    slab = slab.at[WLIN_OFF:WLIN_OFF + H2, 0:OUT].set(w_lin)
    slab = slab.at[BLIN_OFF:BLIN_OFF + 1, 0:OUT].set(params["blin"])
    slab = slab.at[HINIT_OFF:HINIT_OFF + 1, 0:H2].set(h_0.reshape(1, H2))
    return slab


@jax.jit
def rnn_forward(ids, params, h_0):
    """ids: (SEQ,) int32 token ids. Returns (log_probs (1, OUT), h_n (2, 1, HIDDEN))."""
    slab = _pack_slab(ids, params, h_0)

    out = pl.pallas_call(
        rnn_kernel,
        out_shape=jax.ShapeDtypeStruct((OUT_ROWS, SLAB_COLS), jnp.float32),
        in_specs=[pl.BlockSpec(memory_space=pltpu.MemorySpace.VMEM)],   # single packed slab
        out_specs=pl.BlockSpec(memory_space=pltpu.MemorySpace.VMEM),    # single padded tile
    )(slab)

    logp = out[0:1, 0:OUT]
    h_n = out[1, 0:H2].reshape(NUM_LAYERS, 1, HIDDEN)
    return logp, h_n


def rnn_reference(ids, params, h_0):
    """Pure-JAX reference matching the PyTorch forward pass."""
    x = params["emb"][ids]                                   # (SEQ, INPUT)
    h0 = h_0[0]
    h1 = h_0[1]
    for t in range(SEQ):
        xt = x[t:t + 1]
        h0 = jnp.tanh(xt @ params["wih0_t"] + params["bih0"]
                      + h0 @ params["whh0_t"] + params["bhh0"])
        h1 = jnp.tanh(h0 @ params["wih1_t"] + params["bih1"]
                      + h1 @ params["whh1_t"] + params["bhh1"])
    y = h1 @ params["wlin_t"] + params["blin"]
    logp = jax.nn.log_softmax(y, axis=-1)
    hn = jnp.stack([h0, h1], axis=0)
    return logp, hn


def init_params(key):
    """Deterministic synthetic parameters matching PyTorch module shapes."""
    ks = jax.random.split(key, 12)
    scale = 1.0 / jnp.sqrt(jnp.float32(HIDDEN))

    def u(k, shape):
        return jax.random.uniform(k, shape, jnp.float32, -scale, scale)

    emb = jax.random.normal(ks[0], (VOCAB, INPUT), jnp.float32)
    emb = emb.at[1].set(0.0)  # padding_idx = 1

    # PyTorch weights: W_ih (H, in), W_hh (H, H), Linear (OUT, H); store transposed.
    wih0 = u(ks[1], (HIDDEN, INPUT));  whh0 = u(ks[2], (HIDDEN, HIDDEN))
    bih0 = u(ks[3], (HIDDEN,));        bhh0 = u(ks[4], (HIDDEN,))
    wih1 = u(ks[5], (HIDDEN, HIDDEN)); whh1 = u(ks[6], (HIDDEN, HIDDEN))
    bih1 = u(ks[7], (HIDDEN,));        bhh1 = u(ks[8], (HIDDEN,))
    wlin = u(ks[9], (OUT, HIDDEN));    blin = u(ks[10], (OUT,))

    return {
        "emb": emb,
        "wih0_t": wih0.T, "whh0_t": whh0.T,
        "bih0": bih0.reshape(1, HIDDEN), "bhh0": bhh0.reshape(1, HIDDEN),
        "wih1_t": wih1.T, "whh1_t": whh1.T,
        "bih1": bih1.reshape(1, HIDDEN), "bhh1": bhh1.reshape(1, HIDDEN),
        "wlin_t": wlin.T, "blin": blin.reshape(1, OUT),
    }


if __name__ == "__main__":
    key = jax.random.PRNGKey(0)
    k_param, k_ids, k_h0 = jax.random.split(key, 3)

    params = init_params(k_param)
    ids = jax.random.randint(k_ids, (SEQ,), 0, VOCAB, dtype=jnp.int32)
    # Deterministic stand-in for torch.randn(2, 1, 20) drawn in forward().
    h_0 = jax.random.normal(k_h0, (NUM_LAYERS, 1, HIDDEN), jnp.float32)

    log_probs, h_n = rnn_forward(ids, params, h_0)
    jax.block_until_ready((log_probs, h_n))

    assert log_probs.shape == (1, OUT)
    assert h_n.shape == (NUM_LAYERS, 1, HIDDEN)

    ref_logp, ref_hn = rnn_reference(ids, params, h_0)
    assert jnp.allclose(log_probs, ref_logp, atol=1e-4, rtol=1e-4)
    assert jnp.allclose(h_n, ref_hn, atol=1e-4, rtol=1e-4)
    print("KERNEL_OK")
</pallas_src>

<mosaic_0001>
module attributes {stable_mosaic.version = 11 : i64} {
  func.func @rnn_kernel(%arg0: memref<128x128xf32, #tpu.memory_space<vmem>>, %arg1: memref<8x128xf32, #tpu.memory_space<vmem>>) attributes {dimension_semantics = [], scalar_prefetch = 0 : i64, scratch_operands = 0 : i64, tpu.core_type = #tpu.core_type<tc>} {
    %c0 = arith.constant 0 : index
    %c0_0 = arith.constant 0 : index
    %0 = vector.load %arg0[%c0, %c0_0] : memref<128x128xf32, #tpu.memory_space<vmem>>, vector<8x1xf32>
    %c8 = arith.constant 8 : index
    %c0_1 = arith.constant 0 : index
    %1 = vector.load %arg0[%c8, %c0_1] : memref<128x128xf32, #tpu.memory_space<vmem>>, vector<10x40xf32>
    %c24 = arith.constant 24 : index
    %c0_2 = arith.constant 0 : index
    %2 = vector.load %arg0[%c24, %c0_2] : memref<128x128xf32, #tpu.memory_space<vmem>>, vector<1x40xf32>
    %c32 = arith.constant 32 : index
    %c0_3 = arith.constant 0 : index
    %3 = vector.load %arg0[%c32, %c0_3] : memref<128x128xf32, #tpu.memory_space<vmem>>, vector<40x40xf32>
    %c72 = arith.constant 72 : index
    %c0_4 = arith.constant 0 : index
    %4 = vector.load %arg0[%c72, %c0_4] : memref<128x128xf32, #tpu.memory_space<vmem>>, vector<40x5xf32>
    %c112 = arith.constant 112 : index
    %c0_5 = arith.constant 0 : index
    %5 = vector.load %arg0[%c112, %c0_5] : memref<128x128xf32, #tpu.memory_space<vmem>>, vector<1x5xf32>
    %c120 = arith.constant 120 : index
    %c0_6 = arith.constant 0 : index
    %6 = vector.load %arg0[%c120, %c0_6] : memref<128x128xf32, #tpu.memory_space<vmem>>, vector<1x40xf32>
    %7 = arith.fptosi %0 : vector<8x1xf32> to vector<8x1xi32>
    %8 = tpu.iota {dimensions = array<i32: 1>} : vector<8x10xi32>
    %9 = vector.broadcast %7 : vector<8x1xi32> to vector<8x10xi32>
    %10 = arith.cmpi eq, %9, %8 : vector<8x10xi32>
    %11 = arith.extui %10 : vector<8x10xi1> to vector<8x10xi32>
    %12 = arith.sitofp %11 : vector<8x10xi32> to vector<8x10xf32>
    %cst = arith.constant dense<0.000000e+00> : vector<8x40xf32>
    %13 = tpu.matmul %12, %1, %cst {dimension_numbers = #tpu.dot_dimension_numbers<[1], [0], [0], [1], [0, 0, 1, 1], [], []>} : vector<8x10xf32>, vector<10x40xf32>, vector<8x40xf32> -> vector<8x40xf32>
    %14 = vector.broadcast %2 : vector<1x40xf32> to vector<8x40xf32>
    %15 = arith.addf %13, %14 : vector<8x40xf32>
    %16 = tpu.iota {dimensions = array<i32: 1>} : vector<1x40xi32>
    %c20_i32 = arith.constant 20 : i32
    %17 = vector.broadcast %c20_i32 : i32 to vector<1x40xi32>
    %18 = arith.cmpi slt, %16, %17 : vector<1x40xi32>
    %cst_7 = arith.constant dense<0.000000e+00> : vector<1x40xf32>
    %19 = tpu.matmul %6, %3, %cst_7 {dimension_numbers = #tpu.dot_dimension_numbers<[1], [0], [0], [1], [0, 0, 1, 1], [], []>} : vector<1x40xf32>, vector<40x40xf32>, vector<1x40xf32> -> vector<1x40xf32>
    %20 = vector.extract_strided_slice %15 {offsets = [0, 0], sizes = [1, 40], strides = [1, 1]} : vector<8x40xf32> to vector<1x40xf32>
    %21 = arith.addf %19, %20 : vector<1x40xf32>
    %22 = math.tanh %21 : vector<1x40xf32>
    %23 = arith.select %18, %22, %6 : vector<1x40xi1>, vector<1x40xf32>
    %cst_8 = arith.constant dense<0.000000e+00> : vector<1x40xf32>
    %24 = tpu.matmul %23, %3, %cst_8 {dimension_numbers = #tpu.dot_dimension_numbers<[1], [0], [0], [1], [0, 0, 1, 1], [], []>} : vector<1x40xf32>, vector<40x40xf32>, vector<1x40xf32> -> vector<1x40xf32>
    %25 = vector.extract_strided_slice %15 {offsets = [1, 0], sizes = [1, 40], strides = [1, 1]} : vector<8x40xf32> to vector<1x40xf32>
    %26 = arith.addf %24, %25 : vector<1x40xf32>
    %27 = math.tanh %26 : vector<1x40xf32>
    %cst_9 = arith.constant dense<0.000000e+00> : vector<1x40xf32>
    %28 = tpu.matmul %27, %3, %cst_9 {dimension_numbers = #tpu.dot_dimension_numbers<[1], [0], [0], [1], [0, 0, 1, 1], [], []>} : vector<1x40xf32>, vector<40x40xf32>, vector<1x40xf32> -> vector<1x40xf32>
    %29 = vector.extract_strided_slice %15 {offsets = [2, 0], sizes = [1, 40], strides = [1, 1]} : vector<8x40xf32> to vector<1x40xf32>
    %30 = arith.addf %28, %29 : vector<1x40xf32>
    %31 = math.tanh %30 : vector<1x40xf32>
    %cst_10 = arith.constant dense<0.000000e+00> : vector<1x40xf32>
    %32 = tpu.matmul %31, %3, %cst_10 {dimension_numbers = #tpu.dot_dimension_numbers<[1], [0], [0], [1], [0, 0, 1, 1], [], []>} : vector<1x40xf32>, vector<40x40xf32>, vector<1x40xf32> -> vector<1x40xf32>
    %33 = vector.extract_strided_slice %15 {offsets = [3, 0], sizes = [1, 40], strides = [1, 1]} : vector<8x40xf32> to vector<1x40xf32>
    %34 = arith.addf %32, %33 : vector<1x40xf32>
    %35 = math.tanh %34 : vector<1x40xf32>
    %cst_11 = arith.constant dense<0.000000e+00> : vector<1x40xf32>
    %36 = tpu.matmul %35, %3, %cst_11 {dimension_numbers = #tpu.dot_dimension_numbers<[1], [0], [0], [1], [0, 0, 1, 1], [], []>} : vector<1x40xf32>, vector<40x40xf32>, vector<1x40xf32> -> vector<1x40xf32>
    %37 = vector.extract_strided_slice %15 {offsets = [4, 0], sizes = [1, 40], strides = [1, 1]} : vector<8x40xf32> to vector<1x40xf32>
    %38 = arith.addf %36, %37 : vector<1x40xf32>
    %39 = math.tanh %38 : vector<1x40xf32>
    %cst_12 = arith.constant dense<0.000000e+00> : vector<1x40xf32>
    %40 = tpu.matmul %39, %3, %cst_12 {dimension_numbers = #tpu.dot_dimension_numbers<[1], [0], [0], [1], [0, 0, 1, 1], [], []>} : vector<1x40xf32>, vector<40x40xf32>, vector<1x40xf32> -> vector<1x40xf32>
    %41 = vector.extract_strided_slice %15 {offsets = [5, 0], sizes = [1, 40], strides = [1, 1]} : vector<8x40xf32> to vector<1x40xf32>
    %42 = arith.addf %40, %41 : vector<1x40xf32>
    %43 = math.tanh %42 : vector<1x40xf32>
    %cst_13 = arith.constant dense<0.000000e+00> : vector<1x40xf32>
    %44 = tpu.matmul %43, %3, %cst_13 {dimension_numbers = #tpu.dot_dimension_numbers<[1], [0], [0], [1], [0, 0, 1, 1], [], []>} : vector<1x40xf32>, vector<40x40xf32>, vector<1x40xf32> -> vector<1x40xf32>
    %45 = vector.extract_strided_slice %15 {offsets = [6, 0], sizes = [1, 40], strides = [1, 1]} : vector<8x40xf32> to vector<1x40xf32>
    %46 = arith.addf %44, %45 : vector<1x40xf32>
    %47 = math.tanh %46 : vector<1x40xf32>
    %cst_14 = arith.constant dense<0.000000e+00> : vector<1x40xf32>
    %48 = tpu.matmul %47, %3, %cst_14 {dimension_numbers = #tpu.dot_dimension_numbers<[1], [0], [0], [1], [0, 0, 1, 1], [], []>} : vector<1x40xf32>, vector<40x40xf32>, vector<1x40xf32> -> vector<1x40xf32>
    %49 = vector.extract_strided_slice %15 {offsets = [7, 0], sizes = [1, 40], strides = [1, 1]} : vector<8x40xf32> to vector<1x40xf32>
    %50 = arith.addf %48, %49 : vector<1x40xf32>
    %51 = math.tanh %50 : vector<1x40xf32>
    %cst_15 = arith.constant dense<0.000000e+00> : vector<1x40xf32>
    %52 = tpu.matmul %51, %3, %cst_15 {dimension_numbers = #tpu.dot_dimension_numbers<[1], [0], [0], [1], [0, 0, 1, 1], [], []>} : vector<1x40xf32>, vector<40x40xf32>, vector<1x40xf32> -> vector<1x40xf32>
    %53 = arith.addf %52, %2 : vector<1x40xf32>
    %54 = math.tanh %53 : vector<1x40xf32>
    %55 = arith.select %18, %51, %54 : vector<1x40xi1>, vector<1x40xf32>
    %cst_16 = arith.constant dense<0.000000e+00> : vector<1x5xf32>
    %56 = tpu.matmul %55, %4, %cst_16 {dimension_numbers = #tpu.dot_dimension_numbers<[1], [0], [0], [1], [0, 0, 1, 1], [], []>} : vector<1x40xf32>, vector<40x5xf32>, vector<1x5xf32> -> vector<1x5xf32>
    %57 = arith.addf %56, %5 : vector<1x5xf32>
    %cst_17 = arith.constant dense<0xFF800000> : vector<1xf32>
    %58 = vector.multi_reduction <maximumf>, %57, %cst_17 [1] : vector<1x5xf32> to vector<1xf32>
    %59 = vector.shape_cast %58 : vector<1xf32> to vector<1x1xf32>
    %60 = vector.broadcast %59 : vector<1x1xf32> to vector<1x5xf32>
    %61 = arith.subf %57, %60 : vector<1x5xf32>
    %62 = math.exp %61 : vector<1x5xf32>
    %cst_18 = arith.constant dense<0.000000e+00> : vector<1xf32>
    %63 = vector.multi_reduction <add>, %62, %cst_18 [1] : vector<1x5xf32> to vector<1xf32>
    %64 = vector.shape_cast %63 : vector<1xf32> to vector<1x1xf32>
    %65 = math.log %64 : vector<1x1xf32>
    %66 = arith.addf %65, %59 : vector<1x1xf32>
    %67 = vector.broadcast %66 : vector<1x1xf32> to vector<1x5xf32>
    %68 = arith.subf %57, %67 : vector<1x5xf32>
    %cst_19 = arith.constant 0.000000e+00 : f32
    %69 = vector.broadcast %cst_19 : f32 to vector<1x123xf32>
    %70 = tpu.concatenate %68, %69 in 1 : vector<1x5xf32>, vector<1x123xf32> -> vector<1x128xf32>
    %cst_20 = arith.constant 0.000000e+00 : f32
    %71 = vector.broadcast %cst_20 : f32 to vector<1x88xf32>
    %72 = tpu.concatenate %55, %71 in 1 : vector<1x40xf32>, vector<1x88xf32> -> vector<1x128xf32>
    %cst_21 = arith.constant 0.000000e+00 : f32
    %73 = vector.broadcast %cst_21 : f32 to vector<6x128xf32>
    %74 = tpu.concatenate %70, %72, %73 in 0 : vector<1x128xf32>, vector<1x128xf32>, vector<6x128xf32> -> vector<8x128xf32>
    %c0_22 = arith.constant 0 : index
    %c0_23 = arith.constant 0 : index
    %75 = vector.load %arg1[%c0_22, %c0_23] : memref<8x128xf32, #tpu.memory_space<vmem>>, vector<8x128xf32>
    tpu.vector_store %arg1[%c0_22, %c0_23], %74 {strides = array<i32>} : memref<8x128xf32, #tpu.memory_space<vmem>>, vector<8x128xf32>,
    return
  }
}

</mosaic_0001>

<llo_original>
// kernel: squeeze.1
$region0: #{squeeze.1}
  %s0 = inlined_call_operand.vmem [shape: f32[40], index: 0, kind: input, shape index: {}]
  %s1 = inlined_call_operand.hbm [shape: f32[2,1,20], index: 1, kind: output, shape index: {}]
  $region1: #{squeeze.1} parent=0
    #allocation0 [shape = 'u8[1024]{0}', space=vmem, size = 0x400, scoped, tag = 'operand span for operand 1']
    #allocation1 [shape = 's32[1]{0}', space=sflag, size = 0x4, scoped, tag = 'scoped memory for squeeze.1']
    #allocation2 [shape = 'u8[4096]{0}', space=vmem, size = 0x1000, scoped, tag = 'scoped mem for output reshape']
    #allocation3 [shape = 'u8[4096]{0}', space=vmem, size = 0x1000, scoped, tag = 'scoped mem for input reshape']
    %2 = vsyncpa [#allocation1], 0
    %s4 = sshllo.u32 0, 1
    %v5 = vld [vmem:[%s0] sm:%s4]
    %6 = vst [vmem:[#allocation3] sm:%s4] %v5
    %v7 = vld [vmem:[#allocation3] sm:$0x1]
    %vm8 = vcmask 162816
    %9 = vst.msk [vmem:[#allocation2] sm:$0x1] %vm8, %v7
    %v10 = vld [vmem:[#allocation3] sm:$0x1]
    %11 = vrot.lane.b32.xlu0 %v10, 108
    %v12 = vpop.permute.xlu0 %11
    %vm13 = vcmask 162816
    %s14 = scalar_lea.vmem [#allocation2], 1
    %15 = vst.msk [vmem:[%s14] sm:$0x1] %vm13, %v12
    %s17 = sshllo.u32 0, 2
    %v19 = vld [vmem:[#allocation2] sm:%s17]
    %s20 = sshllo.u32 0, 2
    %21 = vst [vmem:[#allocation0] sm:%s20] %v19
    %s23 = ssub.s32 32, 32
    %24 = vsyncadd [#allocation1], %s23
    %s26 = sshll.u32 [#allocation0], 4
    %s27 = int_to_ptr.vmem [resolvable:$true] %s26
    %29 = dma.vmem_to_hbm [thread:$0]  %s27, 32, %s1, [#allocation1]
    %30 = dma.done [#allocation1], 32
    %31 = vsyncpa [#allocation1], 1

// kernel: rnn_forward.1
$region0: #{rnn_forward.1}
  #allocation0 [shape = 'u32[]', space=smem, size = 0x4, offset = 0x4, fixed_abs, tag = 'smem constant byte address 0x4 - core index']
  #allocation1 [shape = 'u32[144,128]{1,0:T(1,128)}', space=vmem, size = 0x12000, scoped, tag = 'internal scratch']
  %s0 = inlined_call_operand.vmem [shape: f32[128,128], index: 0, kind: input, shape index: {}]
  %s1 = inlined_call_operand.vmem [shape: f32[8,128], index: 1, kind: output, shape index: {}]
  %s2 = sld [smem:[#allocation0]]
  $region14: #{rnn_forward.1} parent=0
    _
  %s4 = ssub.s32 1, %s2
  %s5 = scalar_select 0, %s4, %s2
  // Predicated region
  $region2: #{rnn_forward.1} parent=0 // pred_check
    _
  $region3: #{rnn_forward.1} parent=0 // pred_check_branch
    %7 = sbr.rel (0) target = $region5
  $region4: #{rnn_forward.1} parent=0 // pred_region
    _
  $region5: #{rnn_forward.1} parent=0 // pred_fallthru
    _
  %v8 = vld [vmem:[%s0] sm:$0xff]
  %v9 = vld [vmem:[%s0 + $0x8] sm:$0xff]
  %v10 = vld [vmem:[%s0 + $0x10] sm:$0x3]
  %v11 = vld [vmem:[%s0 + $0x18] sm:$0x1]
  %v12 = vld [vmem:[%s0 + $0x20] sm:$0xff]
  %v13 = vld [vmem:[%s0 + $0x28] sm:$0xff]
  %v14 = vld [vmem:[%s0 + $0x30] sm:$0xff]
  %v15 = vld [vmem:[%s0 + $0x38] sm:$0xff]
  %v16 = vld [vmem:[%s0 + $0x40] sm:$0xff]
  %v17 = vld [vmem:[%s0 + $0x48] sm:$0xff]
  %v18 = vld [vmem:[%s0 + $0x50] sm:$0xff]
  %v19 = vld [vmem:[%s0 + $0x58] sm:$0xff]
  %v20 = vld [vmem:[%s0 + $0x60] sm:$0xff]
  %v21 = vld [vmem:[%s0 + $0x68] sm:$0xff]
  %v22 = vld [vmem:[%s0 + $0x70] sm:$0x1]
  %v23 = vld [vmem:[%s0 + $0x78] sm:$0x1]
  %v24 = vcvt.f32.s32.to.zero.pseudo %v8
  %v25 = vlaneseq
  %v26 = vand.u32 %v25, 127
  %27 = vset.pattern.permute.xlu0 0
  %28 = vperm.xlu0 %27, %v24
  %v29 = vpop.permute.xlu0 %28
  %vm30 = vcmp.eq.s32.totalorder %v29, %v26
  %v31 = vsel %vm30, 1, 0
  %v32 = vcvt.s32.f32 %v31
  %v33 = vlaneseq
  %v34 = vshrl.u32 %v33, 7
  %v35 = vsub.s32 0, %v34
  %v36 = vrot.slane %v11, %v35
  %vm37 = vcmask 80896
  %v39 = vsel %vm37, %v32, 0
  %vm41 = vcmask 1041408
  %v43 = vsel %vm41, %v10, 0
  %45 = vmatprep.subr.mxu0 0.0
  %46 = vmatpush1.msra.mxu0 %v9
  %47 = vmatprep.subr.mxu0 0.0
  %48 = vmatpush1.msra.mxu0 %v43
  %49 = vmatprep.subr.mxu0 0.0
  %50 = vmatpush1.msra.mxu0 0.0
  %51 = vmatprep.subr.mxu0 0.0
  %52 = vmatpush1.msra.mxu0 0.0
  %53 = vmatprep.subr.mxu0 0.0
  %54 = vmatpush1.msra.mxu0 0.0
  %55 = vmatprep.subr.mxu0 0.0
  %56 = vmatpush1.msra.mxu0 0.0
  %57 = vmatprep.subr.mxu0 0.0
  %58 = vmatpush1.msra.mxu0 0.0
  %59 = vmatprep.subr.mxu0 0.0
  %60 = vmatpush1.msra.mxu0 0.0
  %61 = vmatprep.subr.mxu0 0.0
  %62 = vmatpush1.msra.mxu0 0.0
  %63 = vmatprep.subr.mxu0 0.0
  %64 = vmatpush1.msra.mxu0 0.0
  %65 = vmatprep.subr.mxu0 0.0
  %66 = vmatpush1.msra.mxu0 0.0
  %67 = vmatprep.subr.mxu0 0.0
  %68 = vmatpush1.msra.mxu0 0.0
  %69 = vmatprep.subr.mxu0 0.0
  %70 = vmatpush1.msra.mxu0 0.0
  %71 = vmatprep.subr.mxu0 0.0
  %72 = vmatpush1.msra.mxu0 0.0
  %73 = vmatprep.subr.mxu0 0.0
  %74 = vmatpush1.msra.mxu0 0.0
  %75 = vmatprep.subr.mxu0 0.0
  %76 = vmatpush1.msra.mxu0 0.0
  %77 = vmatprep.subr.mxu0 0.0
  %78 = vmatpush1.msra.mxu0 0.0
  %79 = vmatprep.subr.mxu0 0.0
  %80 = vmatpush1.msra.mxu0 0.0
  %81 = vmatprep.subr.mxu0 0.0
  %82 = vmatpush1.msra.mxu0 0.0
  %83 = vmatprep.subr.mxu0 0.0
  %84 = vmatpush1.msra.mxu0 0.0
  %85 = vmatprep.subr.mxu0 0.0
  %86 = vmatpush1.msra.mxu0 0.0
  %87 = vmatprep.subr.mxu0 0.0
  %88 = vmatpush1.msra.mxu0 0.0
  %89 = vmatprep.subr.mxu0 0.0
  %90 = vmatpush1.msra.mxu0 0.0
  %91 = vmatprep.subr.mxu0 0.0
  %92 = vmatpush1.msra.mxu0 0.0
  %93 = vmatprep.subr.mxu0 0.0
  %94 = vmatpush1.msra.mxu0 0.0
  %95 = vmatprep.subr.mxu0 0.0
  %96 = vmatpush1.msra.mxu0 0.0
  %97 = vmatprep.subr.mxu0 0.0
  %98 = vmatpush1.msra.mxu0 0.0
  %99 = vmatprep.subr.mxu0 0.0
  %100 = vmatpush1.msra.mxu0 0.0
  %101 = vmatprep.subr.mxu0 0.0
  %102 = vmatpush1.msra.mxu0 0.0
  %103 = vmatprep.subr.mxu0 0.0
  %104 = vmatpush1.msra.mxu0 0.0
  %105 = vmatprep.subr.mxu0 0.0
  %106 = vmatpush1.msra.mxu0 0.0
  %107 = vmatprep.subr.mxu0 0.0
  %108 = vmatpush1.msra.mxu0 0.0
  %109 = vmatprep.mubr.f32.mxu0 0.0
  %110 = vmatmul.mubr.f32.gmra.mrb[0].mxu0 %v39
  %v111 = vpop.f32.mrb[0].mxu0
  %v112 = vadd.f32 %v36, %v111
  %v113 = vpop.f32.mrb[0].mxu0
  %114 = vdwg.mxu0
  %vm115 = vcmp.lt.s32.totalorder %v26, 20
  %vm116 = vcmask 326656
  %v118 = vsel %vm116, %v23, 0
  %120 = vmatprep.subr.mxu0 0.0
  %121 = vmatpush1.msra.mxu0 %v12
  %122 = vmatprep.subr.mxu0 0.0
  %123 = vmatpush1.msra.mxu0 %v13
  %124 = vmatprep.subr.mxu0 0.0
  %125 = vmatpush1.msra.mxu0 %v14
  %126 = vmatprep.subr.mxu0 0.0
  %127 = vmatpush1.msra.mxu0 %v15
  %128 = vmatprep.subr.mxu0 0.0
  %129 = vmatpush1.msra.mxu0 %v16
  %130 = vmatprep.subr.mxu0 0.0
  %131 = vmatpush1.msra.mxu0 0.0
  %132 = vmatprep.subr.mxu0 0.0
  %133 = vmatpush1.msra.mxu0 0.0
  %134 = vmatprep.subr.mxu0 0.0
  %135 = vmatpush1.msra.mxu0 0.0
  %136 = vmatprep.subr.mxu0 0.0
  %137 = vmatpush1.msra.mxu0 0.0
  %138 = vmatprep.subr.mxu0 0.0
  %139 = vmatpush1.msra.mxu0 0.0
  %140 = vmatprep.subr.mxu0 0.0
  %141 = vmatpush1.msra.mxu0 0.0
  %142 = vmatprep.subr.mxu0 0.0
  %143 = vmatpush1.msra.mxu0 0.0
  %144 = vmatprep.subr.mxu0 0.0
  %145 = vmatpush1.msra.mxu0 0.0
  %146 = vmatprep.subr.mxu0 0.0
  %147 = vmatpush1.msra.mxu0 0.0
  %148 = vmatprep.subr.mxu0 0.0
  %149 = vmatpush1.msra.mxu0 0.0
  %150 = vmatprep.subr.mxu0 0.0
  %151 = vmatpush1.msra.mxu0 0.0
  %152 = vmatprep.subr.mxu0 0.0
  %153 = vmatpush1.msra.mxu0 0.0
  %154 = vmatprep.subr.mxu0 0.0
  %155 = vmatpush1.msra.mxu0 0.0
  %156 = vmatprep.subr.mxu0 0.0
  %157 = vmatpush1.msra.mxu0 0.0
  %158 = vmatprep.subr.mxu0 0.0
  %159 = vmatpush1.msra.mxu0 0.0
  %160 = vmatprep.subr.mxu0 0.0
  %161 = vmatpush1.msra.mxu0 0.0
  %162 = vmatprep.subr.mxu0 0.0
  %163 = vmatpush1.msra.mxu0 0.0
  %164 = vmatprep.subr.mxu0 0.0
  %165 = vmatpush1.msra.mxu0 0.0
  %166 = vmatprep.subr.mxu0 0.0
  %167 = vmatpush1.msra.mxu0 0.0
  %168 = vmatprep.subr.mxu0 0.0
  %169 = vmatpush1.msra.mxu0 0.0
  %170 = vmatprep.subr.mxu0 0.0
  %171 = vmatpush1.msra.mxu0 0.0
  %172 = vmatprep.subr.mxu0 0.0
  %173 = vmatpush1.msra.mxu0 0.0
  %174 = vmatprep.subr.mxu0 0.0
  %175 = vmatpush1.msra.mxu0 0.0
  %176 = vmatprep.subr.mxu0 0.0
  %177 = vmatpush1.msra.mxu0 0.0
  %178 = vmatprep.subr.mxu0 0.0
  %179 = vmatpush1.msra.mxu0 0.0
  %180 = vmatprep.subr.mxu0 0.0
  %181 = vmatpush1.msra.mxu0 0.0
  %182 = vmatprep.subr.mxu0 0.0
  %183 = vmatpush1.msra.mxu0 0.0
  %184 = vmatprep.mubr.f32.mxu0 0.0
  %185 = vmatmul.mubr.f32.gmra.mrb[0].mxu0 %v118
  %v186 = vpop.f32.mrb[0].mxu0
  %v187 = vadd.f32 %v112, %v186
  %v188 = vpop.f32.mrb[0].mxu0
  %189 = vdwg.mxu0
  %v190 = vtanh.pop %v187
  %v191 = vsel %vm115, %v190, %v23
  %v193 = vrot.slane %v112, 1
  %v196 = vsel %vm116, %v191, 0
  %198 = vmatprep.subr.mxu0 0.0
  %199 = vmatpush1.msra.mxu0 %v12
  %200 = vmatprep.subr.mxu0 0.0
  %201 = vmatpush1.msra.mxu0 %v13
  %202 = vmatprep.subr.mxu0 0.0
  %203 = vmatpush1.msra.mxu0 %v14
  %204 = vmatprep.subr.mxu0 0.0
  %205 = vmatpush1.msra.mxu0 %v15
  %206 = vmatprep.subr.mxu0 0.0
  %207 = vmatpush1.msra.mxu0 %v16
  %208 = vmatprep.subr.mxu0 0.0
  %209 = vmatpush1.msra.mxu0 0.0
  %210 = vmatprep.subr.mxu0 0.0
  %211 = vmatpush1.msra.mxu0 0.0
  %212 = vmatprep.subr.mxu0 0.0
  %213 = vmatpush1.msra.mxu0 0.0
  %214 = vmatprep.subr.mxu0 0.0
  %215 = vmatpush1.msra.mxu0 0.0
  %216 = vmatprep.subr.mxu0 0.0
  %217 = vmatpush1.msra.mxu0 0.0
  %218 = vmatprep.subr.mxu0 0.0
  %219 = vmatpush1.msra.mxu0 0.0
  %220 = vmatprep.subr.mxu0 0.0
  %221 = vmatpush1.msra.mxu0 0.0
  %222 = vmatprep.subr.mxu0 0.0
  %223 = vmatpush1.msra.mxu0 0.0
  %224 = vmatprep.subr.mxu0 0.0
  %225 = vmatpush1.msra.mxu0 0.0
  %226 = vmatprep.subr.mxu0 0.0
  %227 = vmatpush1.msra.mxu0 0.0
  %228 = vmatprep.subr.mxu0 0.0
  %229 = vmatpush1.msra.mxu0 0.0
  %230 = vmatprep.subr.mxu0 0.0
  %231 = vmatpush1.msra.mxu0 0.0
  %232 = vmatprep.subr.mxu0 0.0
  %233 = vmatpush1.msra.mxu0 0.0
  %234 = vmatprep.subr.mxu0 0.0
  %235 = vmatpush1.msra.mxu0 0.0
  %236 = vmatprep.subr.mxu0 0.0
  %237 = vmatpush1.msra.mxu0 0.0
  %238 = vmatprep.subr.mxu0 0.0
  %239 = vmatpush1.msra.mxu0 0.0
  %240 = vmatprep.subr.mxu0 0.0
  %241 = vmatpush1.msra.mxu0 0.0
  %242 = vmatprep.subr.mxu0 0.0
  %243 = vmatpush1.msra.mxu0 0.0
  %244 = vmatprep.subr.mxu0 0.0
  %245 = vmatpush1.msra.mxu0 0.0
  %246 = vmatprep.subr.mxu0 0.0
  %247 = vmatpush1.msra.mxu0 0.0
  %248 = vmatprep.subr.mxu0 0.0
  %249 = vmatpush1.msra.mxu0 0.0
  %250 = vmatprep.subr.mxu0 0.0
  %251 = vmatpush1.msra.mxu0 0.0
  %252 = vmatprep.subr.mxu0 0.0
  %253 = vmatpush1.msra.mxu0 0.0
  %254 = vmatprep.subr.mxu0 0.0
  %255 = vmatpush1.msra.mxu0 0.0
  %256 = vmatprep.subr.mxu0 0.0
  %257 = vmatpush1.msra.mxu0 0.0
  %258 = vmatprep.subr.mxu0 0.0
  %259 = vmatpush1.msra.mxu0 0.0
  %260 = vmatprep.subr.mxu0 0.0
  %261 = vmatpush1.msra.mxu0 0.0
  %262 = vmatprep.mubr.f32.mxu0 0.0
  %263 = vmatmul.mubr.f32.gmra.mrb[0].mxu0 %v196
  %v264 = vpop.f32.mrb[0].mxu0
  %v265 = vadd.f32 %v193, %v264
  %v266 = vpop.f32.mrb[0].mxu0
  %267 = vdwg.mxu0
  %v268 = vtanh.pop %v265
  %v269 = vrot.slane %v112, 2
  %v272 = vsel %vm116, %v268, 0
  %274 = vmatprep.subr.mxu0 0.0
  %275 = vmatpush1.msra.mxu0 %v12
  %276 = vmatprep.subr.mxu0 0.0
  %277 = vmatpush1.msra.mxu0 %v13
  %278 = vmatprep.subr.mxu0 0.0
  %279 = vmatpush1.msra.mxu0 %v14
  %280 = vmatprep.subr.mxu0 0.0
  %281 = vmatpush1.msra.mxu0 %v15
  %282 = vmatprep.subr.mxu0 0.0
  %283 = vmatpush1.msra.mxu0 %v16
  %284 = vmatprep.subr.mxu0 0.0
  %285 = vmatpush1.msra.mxu0 0.0
  %286 = vmatprep.subr.mxu0 0.0
  %287 = vmatpush1.msra.mxu0 0.0
  %288 = vmatprep.subr.mxu0 0.0
  %289 = vmatpush1.msra.mxu0 0.0
  %290 = vmatprep.subr.mxu0 0.0
  %291 = vmatpush1.msra.mxu0 0.0
  %292 = vmatprep.subr.mxu0 0.0
  %293 = vmatpush1.msra.mxu0 0.0
  %294 = vmatprep.subr.mxu0 0.0
  %295 = vmatpush1.msra.mxu0 0.0
  %296 = vmatprep.subr.mxu0 0.0
  %297 = vmatpush1.msra.mxu0 0.0
  %298 = vmatprep.subr.mxu0 0.0
  %299 = vmatpush1.msra.mxu0 0.0
  %300 = vmatprep.subr.mxu0 0.0
  %301 = vmatpush1.msra.mxu0 0.0
  %302 = vmatprep.subr.mxu0 0.0
  %303 = vmatpush1.msra.mxu0 0.0
  %304 = vmatprep.subr.mxu0 0.0
  %305 = vmatpush1.msra.mxu0 0.0
  %306 = vmatprep.subr.mxu0 0.0
  %307 = vmatpush1.msra.mxu0 0.0
  %308 = vmatprep.subr.mxu0 0.0
  %309 = vmatpush1.msra.mxu0 0.0
  %310 = vmatprep.subr.mxu0 0.0
  %311 = vmatpush1.msra.mxu0 0.0
  %312 = vmatprep.subr.mxu0 0.0
  %313 = vmatpush1.msra.mxu0 0.0
  %314 = vmatprep.subr.mxu0 0.0
  %315 = vmatpush1.msra.mxu0 0.0
  %316 = vmatprep.subr.mxu0 0.0
  %317 = vmatpush1.msra.mxu0 0.0
  %318 = vmatprep.subr.mxu0 0.0
  %319 = vmatpush1.msra.mxu0 0.0
  %320 = vmatprep.subr.mxu0 0.0
  %321 = vmatpush1.msra.mxu0 0.0
  %322 = vmatprep.subr.mxu0 0.0
  %323 = vmatpush1.msra.mxu0 0.0
  %324 = vmatprep.subr.mxu0 0.0
  %325 = vmatpush1.msra.mxu0 0.0
  %326 = vmatprep.subr.mxu0 0.0
  %327 = vmatpush1.msra.mxu0 0.0
  %328 = vmatprep.subr.mxu0 0.0
  %329 = vmatpush1.msra.mxu0 0.0
  %330 = vmatprep.subr.mxu0 0.0
  %331 = vmatpush1.msra.mxu0 0.0
  %332 = vmatprep.subr.mxu0 0.0
  %333 = vmatpush1.msra.mxu0 0.0
  %334 = vmatprep.subr.mxu0 0.0
  %335 = vmatpush1.msra.mxu0 0.0
  %336 = vmatprep.subr.mxu0 0.0
  %337 = vmatpush1.msra.mxu0 0.0
  %338 = vmatprep.mubr.f32.mxu0 0.0
  %339 = vmatmul.mubr.f32.gmra.mrb[0].mxu0 %v272
  %v340 = vpop.f32.mrb[0].mxu0
  %v341 = vadd.f32 %v269, %v340
  %v342 = vpop.f32.mrb[0].mxu0
  %343 = vdwg.mxu0
  %v344 = vtanh.pop %v341
  %v345 = vrot.slane %v112, 3
  %v348 = vsel %vm116, %v344, 0
  %350 = vmatprep.subr.mxu0 0.0
  %351 = vmatpush1.msra.mxu0 %v12
  %352 = vmatprep.subr.mxu0 0.0
  %353 = vmatpush1.msra.mxu0 %v13
  %354 = vmatprep.subr.mxu0 0.0
  %355 = vmatpush1.msra.mxu0 %v14
  %356 = vmatprep.subr.mxu0 0.0
  %357 = vmatpush1.msra.mxu0 %v15
  %358 = vmatprep.subr.mxu0 0.0
  %359 = vmatpush1.msra.mxu0 %v16
  %360 = vmatprep.subr.mxu0 0.0
  %361 = vmatpush1.msra.mxu0 0.0
  %362 = vmatprep.subr.mxu0 0.0
  %363 = vmatpush1.msra.mxu0 0.0
  %364 = vmatprep.subr.mxu0 0.0
  %365 = vmatpush1.msra.mxu0 0.0
  %366 = vmatprep.subr.mxu0 0.0
  %367 = vmatpush1.msra.mxu0 0.0
  %368 = vmatprep.subr.mxu0 0.0
  %369 = vmatpush1.msra.mxu0 0.0
  %370 = vmatprep.subr.mxu0 0.0
  %371 = vmatpush1.msra.mxu0 0.0
  %372 = vmatprep.subr.mxu0 0.0
  %373 = vmatpush1.msra.mxu0 0.0
  %374 = vmatprep.subr.mxu0 0.0
  %375 = vmatpush1.msra.mxu0 0.0
  %376 = vmatprep.subr.mxu0 0.0
  %377 = vmatpush1.msra.mxu0 0.0
  %378 = vmatprep.subr.mxu0 0.0
  %379 = vmatpush1.msra.mxu0 0.0
  %380 = vmatprep.subr.mxu0 0.0
  %381 = vmatpush1.msra.mxu0 0.0
  %382 = vmatprep.subr.mxu0 0.0
  %383 = vmatpush1.msra.mxu0 0.0
  %384 = vmatprep.subr.mxu0 0.0
  %385 = vmatpush1.msra.mxu0 0.0
  %386 = vmatprep.subr.mxu0 0.0
  %387 = vmatpush1.msra.mxu0 0.0
  %388 = vmatprep.subr.mxu0 0.0
  %389 = vmatpush1.msra.mxu0 0.0
  %390 = vmatprep.subr.mxu0 0.0
  %391 = vmatpush1.msra.mxu0 0.0
  %392 = vmatprep.subr.mxu0 0.0
  %393 = vmatpush1.msra.mxu0 0.0
  %394 = vmatprep.subr.mxu0 0.0
  %395 = vmatpush1.msra.mxu0 0.0
  %396 = vmatprep.subr.mxu0 0.0
  %397 = vmatpush1.msra.mxu0 0.0
  %398 = vmatprep.subr.mxu0 0.0
  %399 = vmatpush1.msra.mxu0 0.0
  %400 = vmatprep.subr.mxu0 0.0
  %401 = vmatpush1.msra.mxu0 0.0
  %402 = vmatprep.subr.mxu0 0.0
  %403 = vmatpush1.msra.mxu0 0.0
  %404 = vmatprep.subr.mxu0 0.0
  %405 = vmatpush1.msra.mxu0 0.0
  %406 = vmatprep.subr.mxu0 0.0
  %407 = vmatpush1.msra.mxu0 0.0
  %408 = vmatprep.subr.mxu0 0.0
  %409 = vmatpush1.msra.mxu0 0.0
  %410 = vmatprep.subr.mxu0 0.0
  %411 = vmatpush1.msra.mxu0 0.0
  %412 = vmatprep.subr.mxu0 0.0
  %413 = vmatpush1.msra.mxu0 0.0
  %414 = vmatprep.mubr.f32.mxu0 0.0
  %415 = vmatmul.mubr.f32.gmra.mrb[0].mxu0 %v348
  %v416 = vpop.f32.mrb[0].mxu0
  %v417 = vadd.f32 %v345, %v416
  %v418 = vpop.f32.mrb[0].mxu0
  %419 = vdwg.mxu0
  %v420 = vtanh.pop %v417
  %v421 = vrot.slane %v112, 4
  %v424 = vsel %vm116, %v420, 0
  %426 = vmatprep.subr.mxu0 0.0
  %427 = vmatpush1.msra.mxu0 %v12
  %428 = vmatprep.subr.mxu0 0.0
  %429 = vmatpush1.msra.mxu0 %v13
  %430 = vmatprep.subr.mxu0 0.0
  %431 = vmatpush1.msra.mxu0 %v14
  %432 = vmatprep.subr.mxu0 0.0
  %433 = vmatpush1.msra.mxu0 %v15
  %434 = vmatprep.subr.mxu0 0.0
  %435 = vmatpush1.msra.mxu0 %v16
  %436 = vmatprep.subr.mxu0 0.0
  %437 = vmatpush1.msra.mxu0 0.0
  %438 = vmatprep.subr.mxu0 0.0
  %439 = vmatpush1.msra.mxu0 0.0
  %440 = vmatprep.subr.mxu0 0.0
  %441 = vmatpush1.msra.mxu0 0.0
  %442 = vmatprep.subr.mxu0 0.0
  %443 = vmatpush1.msra.mxu0 0.0
  %444 = vmatprep.subr.mxu0 0.0
  %445 = vmatpush1.msra.mxu0 0.0
  %446 = vmatprep.subr.mxu0 0.0
  %447 = vmatpush1.msra.mxu0 0.0
  %448 = vmatprep.subr.mxu0 0.0
  %449 = vmatpush1.msra.mxu0 0.0
  %450 = vmatprep.subr.mxu0 0.0
  %451 = vmatpush1.msra.mxu0 0.0
  %452 = vmatprep.subr.mxu0 0.0
  %453 = vmatpush1.msra.mxu0 0.0
  %454 = vmatprep.subr.mxu0 0.0
  %455 = vmatpush1.msra.mxu0 0.0
  %456 = vmatprep.subr.mxu0 0.0
  %457 = vmatpush1.msra.mxu0 0.0
  %458 = vmatprep.subr.mxu0 0.0
  %459 = vmatpush1.msra.mxu0 0.0
  %460 = vmatprep.subr.mxu0 0.0
  %461 = vmatpush1.msra.mxu0 0.0
  %462 = vmatprep.subr.mxu0 0.0
  %463 = vmatpush1.msra.mxu0 0.0
  %464 = vmatprep.subr.mxu0 0.0
  %465 = vmatpush1.msra.mxu0 0.0
  %466 = vmatprep.subr.mxu0 0.0
  %467 = vmatpush1.msra.mxu0 0.0
  %468 = vmatprep.subr.mxu0 0.0
  %469 = vmatpush1.msra.mxu0 0.0
  %470 = vmatprep.subr.mxu0 0.0
  %471 = vmatpush1.msra.mxu0 0.0
  %472 = vmatprep.subr.mxu0 0.0
  %473 = vmatpush1.msra.mxu0 0.0
  %474 = vmatprep.subr.mxu0 0.0
  %475 = vmatpush1.msra.mxu0 0.0
  %476 = vmatprep.subr.mxu0 0.0
  %477 = vmatpush1.msra.mxu0 0.0
  %478 = vmatprep.subr.mxu0 0.0
  %479 = vmatpush1.msra.mxu0 0.0
  %480 = vmatprep.subr.mxu0 0.0
  %481 = vmatpush1.msra.mxu0 0.0
  %482 = vmatprep.subr.mxu0 0.0
  %483 = vmatpush1.msra.mxu0 0.0
  %484 = vmatprep.subr.mxu0 0.0
  %485 = vmatpush1.msra.mxu0 0.0
  %486 = vmatprep.subr.mxu0 0.0
  %487 = vmatpush1.msra.mxu0 0.0
  %488 = vmatprep.subr.mxu0 0.0
  %489 = vmatpush1.msra.mxu0 0.0
  %490 = vmatprep.mubr.f32.mxu0 0.0
  %491 = vmatmul.mubr.f32.gmra.mrb[0].mxu0 %v424
  %v492 = vpop.f32.mrb[0].mxu0
  %v493 = vadd.f32 %v421, %v492
  %v494 = vpop.f32.mrb[0].mxu0
  %495 = vdwg.mxu0
  %v496 = vtanh.pop %v493
  %v497 = vrot.slane %v112, 5
  %v500 = vsel %vm116, %v496, 0
  %502 = vmatprep.subr.mxu0 0.0
  %503 = vmatpush1.msra.mxu0 %v12
  %504 = vmatprep.subr.mxu0 0.0
  %505 = vmatpush1.msra.mxu0 %v13
  %506 = vmatprep.subr.mxu0 0.0
  %507 = vmatpush1.msra.mxu0 %v14
  %508 = vmatprep.subr.mxu0 0.0
  %509 = vmatpush1.msra.mxu0 %v15
  %510 = vmatprep.subr.mxu0 0.0
  %511 = vmatpush1.msra.mxu0 %v16
  %512 = vmatprep.subr.mxu0 0.0
  %513 = vmatpush1.msra.mxu0 0.0
  %514 = vmatprep.subr.mxu0 0.0
  %515 = vmatpush1.msra.mxu0 0.0
  %516 = vmatprep.subr.mxu0 0.0
  %517 = vmatpush1.msra.mxu0 0.0
  %518 = vmatprep.subr.mxu0 0.0
  %519 = vmatpush1.msra.mxu0 0.0
  %520 = vmatprep.subr.mxu0 0.0
  %521 = vmatpush1.msra.mxu0 0.0
  %522 = vmatprep.subr.mxu0 0.0
  %523 = vmatpush1.msra.mxu0 0.0
  %524 = vmatprep.subr.mxu0 0.0
  %525 = vmatpush1.msra.mxu0 0.0
  %526 = vmatprep.subr.mxu0 0.0
  %527 = vmatpush1.msra.mxu0 0.0
  %528 = vmatprep.subr.mxu0 0.0
  %529 = vmatpush1.msra.mxu0 0.0
  %530 = vmatprep.subr.mxu0 0.0
  %531 = vmatpush1.msra.mxu0 0.0
  %532 = vmatprep.subr.mxu0 0.0
  %533 = vmatpush1.msra.mxu0 0.0
  %534 = vmatprep.subr.mxu0 0.0
  %535 = vmatpush1.msra.mxu0 0.0
  %536 = vmatprep.subr.mxu0 0.0
  %537 = vmatpush1.msra.mxu0 0.0
  %538 = vmatprep.subr.mxu0 0.0
  %539 = vmatpush1.msra.mxu0 0.0
  %540 = vmatprep.subr.mxu0 0.0
  %541 = vmatpush1.msra.mxu0 0.0
  %542 = vmatprep.subr.mxu0 0.0
  %543 = vmatpush1.msra.mxu0 0.0
  %544 = vmatprep.subr.mxu0 0.0
  %545 = vmatpush1.msra.mxu0 0.0
  %546 = vmatprep.subr.mxu0 0.0
  %547 = vmatpush1.msra.mxu0 0.0
  %548 = vmatprep.subr.mxu0 0.0
  %549 = vmatpush1.msra.mxu0 0.0
  %550 = vmatprep.subr.mxu0 0.0
  %551 = vmatpush1.msra.mxu0 0.0
  %552 = vmatprep.subr.mxu0 0.0
  %553 = vmatpush1.msra.mxu0 0.0
  %554 = vmatprep.subr.mxu0 0.0
  %555 = vmatpush1.msra.mxu0 0.0
  %556 = vmatprep.subr.mxu0 0.0
  %557 = vmatpush1.msra.mxu0 0.0
  %558 = vmatprep.subr.mxu0 0.0
  %559 = vmatpush1.msra.mxu0 0.0
  %560 = vmatprep.subr.mxu0 0.0
  %561 = vmatpush1.msra.mxu0 0.0
  %562 = vmatprep.subr.mxu0 0.0
  %563 = vmatpush1.msra.mxu0 0.0
  %564 = vmatprep.subr.mxu0 0.0
  %565 = vmatpush1.msra.mxu0 0.0
  %566 = vmatprep.mubr.f32.mxu0 0.0
  %567 = vmatmul.mubr.f32.gmra.mrb[0].mxu0 %v500
  %v568 = vpop.f32.mrb[0].mxu0
  %v569 = vadd.f32 %v497, %v568
  %v570 = vpop.f32.mrb[0].mxu0
  %571 = vdwg.mxu0
  %v572 = vtanh.pop %v569
  %v573 = vrot.slane %v112, 6
  %v576 = vsel %vm116, %v572, 0
  %578 = vmatprep.subr.mxu0 0.0
  %579 = vmatpush1.msra.mxu0 %v12
  %580 = vmatprep.subr.mxu0 0.0
  %581 = vmatpush1.msra.mxu0 %v13
  %582 = vmatprep.subr.mxu0 0.0
  %583 = vmatpush1.msra.mxu0 %v14
  %584 = vmatprep.subr.mxu0 0.0
  %585 = vmatpush1.msra.mxu0 %v15
  %586 = vmatprep.subr.mxu0 0.0
  %587 = vmatpush1.msra.mxu0 %v16
  %588 = vmatprep.subr.mxu0 0.0
  %589 = vmatpush1.msra.mxu0 0.0
  %590 = vmatprep.subr.mxu0 0.0
  %591 = vmatpush1.msra.mxu0 0.0
  %592 = vmatprep.subr.mxu0 0.0
  %593 = vmatpush1.msra.mxu0 0.0
  %594 = vmatprep.subr.mxu0 0.0
  %595 = vmatpush1.msra.mxu0 0.0
  %596 = vmatprep.subr.mxu0 0.0
  %597 = vmatpush1.msra.mxu0 0.0
  %598 = vmatprep.subr.mxu0 0.0
  %599 = vmatpush1.msra.mxu0 0.0
  %600 = vmatprep.subr.mxu0 0.0
  %601 = vmatpush1.msra.mxu0 0.0
  %602 = vmatprep.subr.mxu0 0.0
  %603 = vmatpush1.msra.mxu0 0.0
  %604 = vmatprep.subr.mxu0 0.0
  %605 = vmatpush1.msra.mxu0 0.0
  %606 = vmatprep.subr.mxu0 0.0
  %607 = vmatpush1.msra.mxu0 0.0
  %608 = vmatprep.subr.mxu0 0.0
  %609 = vmatpush1.msra.mxu0 0.0
  %610 = vmatprep.subr.mxu0 0.0
  %611 = vmatpush1.msra.mxu0 0.0
  %612 = vmatprep.subr.mxu0 0.0
  %613 = vmatpush1.msra.mxu0 0.0
  %614 = vmatprep.subr.mxu0 0.0
  %615 = vmatpush1.msra.mxu0 0.0
  %616 = vmatprep.subr.mxu0 0.0
  %617 = vmatpush1.msra.mxu0 0.0
  %618 = vmatprep.subr.mxu0 0.0
  %619 = vmatpush1.msra.mxu0 0.0
  %620 = vmatprep.subr.mxu0 0.0
  %621 = vmatpush1.msra.mxu0 0.0
  %622 = vmatprep.subr.mxu0 0.0
  %623 = vmatpush1.msra.mxu0 0.0
  %624 = vmatprep.subr.mxu0 0.0
  %625 = vmatpush1.msra.mxu0 0.0
  %626 = vmatprep.subr.mxu0 0.0
  %627 = vmatpush1.msra.mxu0 0.0
  %628 = vmatprep.subr.mxu0 0.0
  %629 = vmatpush1.msra.mxu0 0.0
  %630 = vmatprep.subr.mxu0 0.0
  %631 = vmatpush1.msra.mxu0 0.0
  %632 = vmatprep.subr.mxu0 0.0
  %633 = vmatpush1.msra.mxu0 0.0
  %634 = vmatprep.subr.mxu0 0.0
  %635 = vmatpush1.msra.mxu0 0.0
  %636 = vmatprep.subr.mxu0 0.0
  %637 = vmatpush1.msra.mxu0 0.0
  %638 = vmatprep.subr.mxu0 0.0
  %639 = vmatpush1.msra.mxu0 0.0
  %640 = vmatprep.subr.mxu0 0.0
  %641 = vmatpush1.msra.mxu0 0.0
  %642 = vmatprep.mubr.f32.mxu0 0.0
  %643 = vmatmul.mubr.f32.gmra.mrb[0].mxu0 %v576
  %v644 = vpop.f32.mrb[0].mxu0
  %v645 = vadd.f32 %v573, %v644
  %v646 = vpop.f32.mrb[0].mxu0
  %647 = vdwg.mxu0
  %v648 = vtanh.pop %v645
  %v649 = vrot.slane %v112, 7
  %v652 = vsel %vm116, %v648, 0
  %654 = vmatprep.subr.mxu0 0.0
  %655 = vmatpush1.msra.mxu0 %v12
  %656 = vmatprep.subr.mxu0 0.0
  %657 = vmatpush1.msra.mxu0 %v13
  %658 = vmatprep.subr.mxu0 0.0
  %659 = vmatpush1.msra.mxu0 %v14
  %660 = vmatprep.subr.mxu0 0.0
  %661 = vmatpush1.msra.mxu0 %v15
  %662 = vmatprep.subr.mxu0 0.0
  %663 = vmatpush1.msra.mxu0 %v16
  %664 = vmatprep.subr.mxu0 0.0
  %665 = vmatpush1.msra.mxu0 0.0
  %666 = vmatprep.subr.mxu0 0.0
  %667 = vmatpush1.msra.mxu0 0.0
  %668 = vmatprep.subr.mxu0 0.0
  %669 = vmatpush1.msra.mxu0 0.0
  %670 = vmatprep.subr.mxu0 0.0
  %671 = vmatpush1.msra.mxu0 0.0
  %672 = vmatprep.subr.mxu0 0.0
  %673 = vmatpush1.msra.mxu0 0.0
  %674 = vmatprep.subr.mxu0 0.0
  %675 = vmatpush1.msra.mxu0 0.0
  %676 = vmatprep.subr.mxu0 0.0
  %677 = vmatpush1.msra.mxu0 0.0
  %678 = vmatprep.subr.mxu0 0.0
  %679 = vmatpush1.msra.mxu0 0.0
  %680 = vmatprep.subr.mxu0 0.0
  %681 = vmatpush1.msra.mxu0 0.0
  %682 = vmatprep.subr.mxu0 0.0
  %683 = vmatpush1.msra.mxu0 0.0
  %684 = vmatprep.subr.mxu0 0.0
  %685 = vmatpush1.msra.mxu0 0.0
  %686 = vmatprep.subr.mxu0 0.0
  %687 = vmatpush1.msra.mxu0 0.0
  %688 = vmatprep.subr.mxu0 0.0
  %689 = vmatpush1.msra.mxu0 0.0
  %690 = vmatprep.subr.mxu0 0.0
  %691 = vmatpush1.msra.mxu0 0.0
  %692 = vmatprep.subr.mxu0 0.0
  %693 = vmatpush1.msra.mxu0 0.0
  %694 = vmatprep.subr.mxu0 0.0
  %695 = vmatpush1.msra.mxu0 0.0
  %696 = vmatprep.subr.mxu0 0.0
  %697 = vmatpush1.msra.mxu0 0.0
  %698 = vmatprep.subr.mxu0 0.0
  %699 = vmatpush1.msra.mxu0 0.0
  %700 = vmatprep.subr.mxu0 0.0
  %701 = vmatpush1.msra.mxu0 0.0
  %702 = vmatprep.subr.mxu0 0.0
  %703 = vmatpush1.msra.mxu0 0.0
  %704 = vmatprep.subr.mxu0 0.0
  %705 = vmatpush1.msra.mxu0 0.0
  %706 = vmatprep.subr.mxu0 0.0
  %707 = vmatpush1.msra.mxu0 0.0
  %708 = vmatprep.subr.mxu0 0.0
  %709 = vmatpush1.msra.mxu0 0.0
  %710 = vmatprep.subr.mxu0 0.0
  %711 = vmatpush1.msra.mxu0 0.0
  %712 = vmatprep.subr.mxu0 0.0
  %713 = vmatpush1.msra.mxu0 0.0
  %714 = vmatprep.subr.mxu0 0.0
  %715 = vmatpush1.msra.mxu0 0.0
  %716 = vmatprep.subr.mxu0 0.0
  %717 = vmatpush1.msra.mxu0 0.0
  %718 = vmatprep.mubr.f32.mxu0 0.0
  %719 = vmatmul.mubr.f32.gmra.mrb[0].mxu0 %v652
  %v720 = vpop.f32.mrb[0].mxu0
  %v721 = vadd.f32 %v649, %v720
  %v722 = vpop.f32.mrb[0].mxu0
  %723 = vdwg.mxu0
  %v724 = vtanh.pop %v721
  %v726 = vsel %vm116, %v724, 0
  %728 = vmatprep.subr.mxu0 0.0
  %729 = vmatpush1.msra.mxu0 %v12
  %730 = vmatprep.subr.mxu0 0.0
  %731 = vmatpush1.msra.mxu0 %v13
  %732 = vmatprep.subr.mxu0 0.0
  %733 = vmatpush1.msra.mxu0 %v14
  %734 = vmatprep.subr.mxu0 0.0
  %735 = vmatpush1.msra.mxu0 %v15
  %736 = vmatprep.subr.mxu0 0.0
  %737 = vmatpush1.msra.mxu0 %v16
  %738 = vmatprep.subr.mxu0 0.0
  %739 = vmatpush1.msra.mxu0 0.0
  %740 = vmatprep.subr.mxu0 0.0
  %741 = vmatpush1.msra.mxu0 0.0
  %742 = vmatprep.subr.mxu0 0.0
  %743 = vmatpush1.msra.mxu0 0.0
  %744 = vmatprep.subr.mxu0 0.0
  %745 = vmatpush1.msra.mxu0 0.0
  %746 = vmatprep.subr.mxu0 0.0
  %747 = vmatpush1.msra.mxu0 0.0
  %748 = vmatprep.subr.mxu0 0.0
  %749 = vmatpush1.msra.mxu0 0.0
  %750 = vmatprep.subr.mxu0 0.0
  %751 = vmatpush1.msra.mxu0 0.0
  %752 = vmatprep.subr.mxu0 0.0
  %753 = vmatpush1.msra.mxu0 0.0
  %754 = vmatprep.subr.mxu0 0.0
  %755 = vmatpush1.msra.mxu0 0.0
  %756 = vmatprep.subr.mxu0 0.0
  %757 = vmatpush1.msra.mxu0 0.0
  %758 = vmatprep.subr.mxu0 0.0
  %759 = vmatpush1.msra.mxu0 0.0
  %760 = vmatprep.subr.mxu0 0.0
  %761 = vmatpush1.msra.mxu0 0.0
  %762 = vmatprep.subr.mxu0 0.0
  %763 = vmatpush1.msra.mxu0 0.0
  %764 = vmatprep.subr.mxu0 0.0
  %765 = vmatpush1.msra.mxu0 0.0
  %766 = vmatprep.subr.mxu0 0.0
  %767 = vmatpush1.msra.mxu0 0.0
  %768 = vmatprep.subr.mxu0 0.0
  %769 = vmatpush1.msra.mxu0 0.0
  %770 = vmatprep.subr.mxu0 0.0
  %771 = vmatpush1.msra.mxu0 0.0
  %772 = vmatprep.subr.mxu0 0.0
  %773 = vmatpush1.msra.mxu0 0.0
  %774 = vmatprep.subr.mxu0 0.0
  %775 = vmatpush1.msra.mxu0 0.0
  %776 = vmatprep.subr.mxu0 0.0
  %777 = vmatpush1.msra.mxu0 0.0
  %778 = vmatprep.subr.mxu0 0.0
  %779 = vmatpush1.msra.mxu0 0.0
  %780 = vmatprep.subr.mxu0 0.0
  %781 = vmatpush1.msra.mxu0 0.0
  %782 = vmatprep.subr.mxu0 0.0
  %783 = vmatpush1.msra.mxu0 0.0
  %784 = vmatprep.subr.mxu0 0.0
  %785 = vmatpush1.msra.mxu0 0.0
  %786 = vmatprep.subr.mxu0 0.0
  %787 = vmatpush1.msra.mxu0 0.0
  %788 = vmatprep.subr.mxu0 0.0
  %789 = vmatpush1.msra.mxu0 0.0
  %790 = vmatprep.subr.mxu0 0.0
  %791 = vmatpush1.msra.mxu0 0.0
  %792 = vmatprep.mubr.f32.mxu0 0.0
  %793 = vmatmul.mubr.f32.gmra.mrb[0].mxu0 %v726
  %v794 = vpop.f32.mrb[0].mxu0
  %v795 = vadd.f32 %v11, %v794
  %v796 = vpop.f32.mrb[0].mxu0
  %797 = vdwg.mxu0
  %v798 = vtanh.pop %v795
  %v799 = vsel %vm115, %v724, %v798
  %v801 = vsel %vm116, %v799, 0
  %803 = vmatprep.subr.mxu0 0.0
  %804 = vmatpush1.msra.mxu0 %v17
  %805 = vmatprep.subr.mxu0 0.0
  %806 = vmatpush1.msra.mxu0 %v18
  %807 = vmatprep.subr.mxu0 0.0
  %808 = vmatpush1.msra.mxu0 %v19
  %809 = vmatprep.subr.mxu0 0.0
  %810 = vmatpush1.msra.mxu0 %v20
  %811 = vmatprep.subr.mxu0 0.0
  %812 = vmatpush1.msra.mxu0 %v21
  %813 = vmatprep.subr.mxu0 0.0
  %814 = vmatpush1.msra.mxu0 0.0
  %815 = vmatprep.subr.mxu0 0.0
  %816 = vmatpush1.msra.mxu0 0.0
  %817 = vmatprep.subr.mxu0 0.0
  %818 = vmatpush1.msra.mxu0 0.0
  %819 = vmatprep.subr.mxu0 0.0
  %820 = vmatpush1.msra.mxu0 0.0
  %821 = vmatprep.subr.mxu0 0.0
  %822 = vmatpush1.msra.mxu0 0.0
  %823 = vmatprep.subr.mxu0 0.0
  %824 = vmatpush1.msra.mxu0 0.0
  %825 = vmatprep.subr.mxu0 0.0
  %826 = vmatpush1.msra.mxu0 0.0
  %827 = vmatprep.subr.mxu0 0.0
  %828 = vmatpush1.msra.mxu0 0.0
  %829 = vmatprep.subr.mxu0 0.0
  %830 = vmatpush1.msra.mxu0 0.0
  %831 = vmatprep.subr.mxu0 0.0
  %832 = vmatpush1.msra.mxu0 0.0
  %833 = vmatprep.subr.mxu0 0.0
  %834 = vmatpush1.msra.mxu0 0.0
  %835 = vmatprep.subr.mxu0 0.0
  %836 = vmatpush1.msra.mxu0 0.0
  %837 = vmatprep.subr.mxu0 0.0
  %838 = vmatpush1.msra.mxu0 0.0
  %839 = vmatprep.subr.mxu0 0.0
  %840 = vmatpush1.msra.mxu0 0.0
  %841 = vmatprep.subr.mxu0 0.0
  %842 = vmatpush1.msra.mxu0 0.0
  %843 = vmatprep.subr.mxu0 0.0
  %844 = vmatpush1.msra.mxu0 0.0
  %845 = vmatprep.subr.mxu0 0.0
  %846 = vmatpush1.msra.mxu0 0.0
  %847 = vmatprep.subr.mxu0 0.0
  %848 = vmatpush1.msra.mxu0 0.0
  %849 = vmatprep.subr.mxu0 0.0
  %850 = vmatpush1.msra.mxu0 0.0
  %851 = vmatprep.subr.mxu0 0.0
  %852 = vmatpush1.msra.mxu0 0.0
  %853 = vmatprep.subr.mxu0 0.0
  %854 = vmatpush1.msra.mxu0 0.0
  %855 = vmatprep.subr.mxu0 0.0
  %856 = vmatpush1.msra.mxu0 0.0
  %857 = vmatprep.subr.mxu0 0.0
  %858 = vmatpush1.msra.mxu0 0.0
  %859 = vmatprep.subr.mxu0 0.0
  %860 = vmatpush1.msra.mxu0 0.0
  %861 = vmatprep.subr.mxu0 0.0
  %862 = vmatpush1.msra.mxu0 0.0
  %863 = vmatprep.subr.mxu0 0.0
  %864 = vmatpush1.msra.mxu0 0.0
  %865 = vmatprep.subr.mxu0 0.0
  %866 = vmatpush1.msra.mxu0 0.0
  %867 = vmatprep.mubr.f32.mxu0 0.0
  %868 = vmatmul.mubr.f32.gmra.mrb[0].mxu0 %v801
  %v869 = vpop.f32.mrb[0].mxu0
  %v870 = vadd.f32 %v22, %v869
  %v871 = vpop.f32.mrb[0].mxu0
  %872 = vdwg.mxu0
  %vm873 = vcmask 32768
  %v874 = vsel %vm873, %v870, -inf
  %875 = vmax.xlane.f32.xlu0 %v874
  %v876 = vpop.xlane.xlu0 %875
  %v877 = vsub.f32 %v870, %v876
  %v878 = vmul.f32 %v877, 1.442695
  %v879 = vpow.pop %v878
  %v880 = vsel %vm873, %v879, 0.0
  %881 = vadd.xlane.f32.xlu0 %v880
  %v882 = vpop.xlane.xlu0 %881
  %v883 = vlog2.pop %v882
  %v884 = vmul.f32 %v883, 0.6931472
  %v885 = vadd.f32 %v884, %v876
  %v886 = vsub.f32 %v870, %v885
  %vm887 = vcmask 39936
  %v888 = vsel %vm887, %v886, 0.0
  %v889 = vsel %vm116, %v799, 0.0
  %v891 = vrot.slane %v889, 7
  %vm893 = vcmask 1040384
  %v894 = vsel %vm893, %v888, %v891
  %v895 = vsel %vm41, %v894, 0.0
  %896 = vst [vmem:[%s1] sm:$0xff] %v895
  // Predicated region
  $region6: #{rnn_forward.1} parent=0 // pred_check
    _
  $region7: #{rnn_forward.1} parent=0 // pred_check_branch
    %898 = sbr.rel (0) target = $region9
  $region8: #{rnn_forward.1} parent=0 // pred_region
    _
  $region9: #{rnn_forward.1} parent=0 // pred_fallthru
    _
  // Predicated region
  $region10: #{rnn_forward.1} parent=0 // pred_check
    _
  $region11: #{rnn_forward.1} parent=0 // pred_check_branch
    %900 = sbr.rel (0) target = $region13
  $region12: #{rnn_forward.1} parent=0 // pred_region
    _
  $region13: #{rnn_forward.1} parent=0 // pred_fallthru
    _

</llo_original>
